<compile_context>
chip_gen: v5e
topology: v5e:2x2
jax: 0.10.0
libtpu: 0.0.40
codegen_flags: <defaults>
</compile_context>

<pallas_src>
import math

import jax
import jax.numpy as jnp
from jax import lax
from jax.experimental import pallas as pl
from jax.experimental.pallas import tpu as pltpu


def _inv_l2_norm_rows(v, eps=1e-12):
    # 1 / max(||v||_2, eps) computed as rsqrt(max(sum(v^2), eps^2)).
    # Matches torch.nn.functional.normalize(dim=1, eps=1e-12) semantics.
    ss = jnp.sum(v * v, axis=-1, keepdims=True)
    return lax.rsqrt(jnp.maximum(ss, eps * eps))


def arcface_kernel(r_ref, x_ref, center_ref, wn_ref, o_ref):
    # r_ref: SMEM scalar; x/center/wn/o: full VMEM blocks.
    r = r_ref[0]

    xc = x_ref[...] - center_ref[...]             # (Bp, Dp), center broadcasts
    xn = xc * _inv_l2_norm_rows(xc)               # row-normalized input

    # F.linear(xn, wn) == xn @ wn.T, done as an NT contraction on the MXU
    # (contract last dim of both operands; no transpose materialized).
    cos = lax.dot_general(
        xn, wn_ref[...],
        dimension_numbers=(((1,), (1,)), ((), ())),
        preferred_element_type=jnp.float32)       # (Bp, Cp)

    # Second row normalization + scalar scale; fold r into the (Bp,1) factor
    # so only one full-size (Bp,Cp) multiply is emitted.
    o_ref[...] = cos * (_inv_l2_norm_rows(cos) * r)


def _round_up(n, m):
    return ((n + m - 1) // m) * m


def _pad2d(a, rows, cols):
    pr, pc = rows - a.shape[0], cols - a.shape[1]
    if pr == 0 and pc == 0:
        return a
    return jnp.pad(a, ((0, pr), (0, pc)))


def arcface_forward(x, weight, center, r):
    """x: (B, D) f32, weight: (C, D) f32, center: (1, D) f32, r: (1,) f32."""
    B, D = x.shape
    C = weight.shape[0]

    # Batch-independent parameter transform: normalize class weights once in
    # the wrapper (cacheable across forward calls).
    wn = weight * _inv_l2_norm_rows(weight)

    # Pad to hardware tiles: lanes (last dim) to 128, sublanes to 8.
    Bp = _round_up(B, 8)
    Dp = _round_up(D, 128)
    Cp = _round_up(C, 128)

    x_p = _pad2d(x, Bp, Dp)
    c_p = _pad2d(center, 1, Dp)
    wn_p = _pad2d(wn, Cp, Dp)

    out_p = pl.pallas_call(
        arcface_kernel,
        out_shape=jax.ShapeDtypeStruct((Bp, Cp), jnp.float32),
        in_specs=[
            pl.BlockSpec(memory_space=pltpu.SMEM),   # r (scalar)
            pl.BlockSpec(memory_space=pltpu.VMEM),   # x (padded)
            pl.BlockSpec(memory_space=pltpu.VMEM),   # center (padded)
            pl.BlockSpec(memory_space=pltpu.VMEM),   # normalized weight (padded)
        ],
        out_specs=pl.BlockSpec(memory_space=pltpu.VMEM),
    )(r, x_p, c_p, wn_p)

    return out_p[:B, :C]


def reference_forward(x, weight, center, r):
    # Torch-faithful reference: sqrt + max + divide.
    def norm_rows(v, eps=1e-12):
        n = jnp.sqrt(jnp.sum(v * v, axis=-1, keepdims=True))
        return v / jnp.maximum(n, eps)

    xn = norm_rows(x - center)
    wn = norm_rows(weight)
    cos = xn @ wn.T
    return norm_rows(cos) * r[0]


if __name__ == "__main__":
    # Small shapes consistent with the module: in_features=32, out_features=16,
    # batch=8.
    B, in_features, out_features = 8, 32, 16

    key = jax.random.PRNGKey(0)
    kx, kw, kc = jax.random.split(key, 3)

    x = jax.random.normal(kx, (B, in_features), dtype=jnp.float32)

    # Deterministic parameter init mirroring __init__:
    #   weight: xavier_normal_ -> std = sqrt(2 / (fan_in + fan_out))
    #   center: small values; r: ones * 10
    xavier_std = math.sqrt(2.0 / (in_features + out_features))
    weight = xavier_std * jax.random.normal(
        kw, (out_features, in_features), dtype=jnp.float32)
    center = 0.1 * jax.random.normal(kc, (1, in_features), dtype=jnp.float32)
    r = jnp.ones((1,), dtype=jnp.float32) * 10.0

    out = arcface_forward(x, weight, center, r)
    out = jax.block_until_ready(out)

    ref = reference_forward(x, weight, center, r)
    assert out.shape == (B, out_features)
    assert jnp.allclose(out, ref, atol=1e-4, rtol=1e-4), (
        f"max abs err {jnp.max(jnp.abs(out - ref))}")

    print("KERNEL_OK")
</pallas_src>

<mosaic_0001>
module attributes {stable_mosaic.version = 11 : i64} {
  func.func @arcface_kernel(%arg0: memref<1xf32, #tpu.memory_space<smem>>, %arg1: memref<8x128xf32, #tpu.memory_space<vmem>>, %arg2: memref<1x128xf32, #tpu.memory_space<vmem>>, %arg3: memref<128x128xf32, #tpu.memory_space<vmem>>, %arg4: memref<8x128xf32, #tpu.memory_space<vmem>>) attributes {dimension_semantics = [], scalar_prefetch = 0 : i64, scratch_operands = 0 : i64, tpu.core_type = #tpu.core_type<tc>} {
    %c0 = arith.constant 0 : index
    %0 = memref.load %arg0[%c0] : memref<1xf32, #tpu.memory_space<smem>>
    %c0_0 = arith.constant 0 : index
    %c0_1 = arith.constant 0 : index
    %1 = vector.load %arg1[%c0_0, %c0_1] : memref<8x128xf32, #tpu.memory_space<vmem>>, vector<8x128xf32>
    %c0_2 = arith.constant 0 : index
    %c0_3 = arith.constant 0 : index
    %2 = vector.load %arg2[%c0_2, %c0_3] : memref<1x128xf32, #tpu.memory_space<vmem>>, vector<1x128xf32>
    %3 = vector.broadcast %2 : vector<1x128xf32> to vector<8x128xf32>
    %4 = arith.subf %1, %3 : vector<8x128xf32>
    %5 = arith.mulf %4, %4 : vector<8x128xf32>
    %cst = arith.constant dense<0.000000e+00> : vector<8xf32>
    %6 = vector.multi_reduction <add>, %5, %cst [1] : vector<8x128xf32> to vector<8xf32>
    %7 = vector.shape_cast %6 : vector<8xf32> to vector<8x1xf32>
    %cst_4 = arith.constant 1.000000e-24 : f32
    %8 = vector.broadcast %cst_4 : f32 to vector<8x1xf32>
    %9 = arith.maximumf %7, %8 : vector<8x1xf32>
    %10 = math.rsqrt %9 : vector<8x1xf32>
    %11 = vector.broadcast %10 : vector<8x1xf32> to vector<8x128xf32>
    %12 = arith.mulf %4, %11 : vector<8x128xf32>
    %c0_5 = arith.constant 0 : index
    %c0_6 = arith.constant 0 : index
    %13 = vector.load %arg3[%c0_5, %c0_6] : memref<128x128xf32, #tpu.memory_space<vmem>>, vector<128x128xf32>
    %cst_7 = arith.constant dense<0.000000e+00> : vector<8x128xf32>
    %14 = tpu.matmul %12, %13, %cst_7 {dimension_numbers = #tpu.dot_dimension_numbers<[1], [1], [0], [0], [0, 0, 1, 0], [], []>} : vector<8x128xf32>, vector<128x128xf32>, vector<8x128xf32> -> vector<8x128xf32>
    %15 = arith.mulf %14, %14 : vector<8x128xf32>
    %cst_8 = arith.constant dense<0.000000e+00> : vector<8xf32>
    %16 = vector.multi_reduction <add>, %15, %cst_8 [1] : vector<8x128xf32> to vector<8xf32>
    %17 = vector.shape_cast %16 : vector<8xf32> to vector<8x1xf32>
    %cst_9 = arith.constant 1.000000e-24 : f32
    %18 = vector.broadcast %cst_9 : f32 to vector<8x1xf32>
    %19 = arith.maximumf %17, %18 : vector<8x1xf32>
    %20 = math.rsqrt %19 : vector<8x1xf32>
    %21 = vector.broadcast %0 : f32 to vector<8x1xf32>
    %22 = arith.mulf %20, %21 : vector<8x1xf32>
    %23 = vector.broadcast %22 : vector<8x1xf32> to vector<8x128xf32>
    %24 = arith.mulf %14, %23 : vector<8x128xf32>
    %c0_10 = arith.constant 0 : index
    %c0_11 = arith.constant 0 : index
    %25 = vector.load %arg4[%c0_10, %c0_11] : memref<8x128xf32, #tpu.memory_space<vmem>>, vector<8x128xf32>
    tpu.vector_store %arg4[%c0_10, %c0_11], %24 {strides = array<i32>} : memref<8x128xf32, #tpu.memory_space<vmem>>, vector<8x128xf32>,
    return
  }
}

</mosaic_0001>

<llo_original>
// kernel: tpu_custom_call.1
$region0: #{tpu_custom_call.1}
  #allocation0 [shape = 'u32[]', space=smem, size = 0x4, offset = 0x4, fixed_abs, tag = 'smem constant byte address 0x4 - core index']
  #allocation1 [shape = 'u32[72,128]{1,0:T(1,128)}', space=vmem, size = 0x9000, scoped, tag = 'internal scratch']
  #allocation2 [shape = 'f32[1]{0:T(128)S(6)}', space=smem, size = 0x200, scoped, tag = 'scoped memory for tpu_custom_call.1']
  %s0 = inlined_call_operand.<no memory space> [shape: f32[1], index: 0, kind: input, shape index: {}]
  %s1 = inlined_call_operand.hbm [shape: f32[8,128], index: 1, kind: input, shape index: {}]
  %s2 = inlined_call_operand.vmem [shape: f32[1,128], index: 2, kind: input, shape index: {}]
  %s3 = inlined_call_operand.hbm [shape: f32[128,128], index: 3, kind: input, shape index: {}]
  %s4 = inlined_call_operand.hbm [shape: f32[8,128], index: 4, kind: output, shape index: {}]
  %s5 = sld [smem:[#allocation0]]
  $region34: #{tpu_custom_call.1} parent=0
    _
  %s7 = ssub.s32 1, %s5
  %s8 = scalar_select 0, %s7, %s5
  %9 = sst [smem:[#allocation2]] %s0
  $region1: #{tpu_custom_call.1} parent=0
    #allocation3 [shape = 'u8[4096]{0}', space=vmem, size = 0x1000, scoped, tag = 'input window, operand 1, single buffered']
    #allocation4 [shape = 's32[1]{0}', space=sflag, size = 0x4, scoped, tag = 'scoped memory for tpu_custom_call.1']
    #allocation5 [shape = 's32[1]{0}', space=sflag, size = 0x4, scoped, tag = 'scoped memory for tpu_custom_call.1']
    #allocation6 [shape = 'u8[65536]{0}', space=vmem, size = 0x10000, scoped, tag = 'input window, operand 3, single buffered']
    #allocation7 [shape = 's32[1]{0}', space=sflag, size = 0x4, scoped, tag = 'scoped memory for tpu_custom_call.1']
    #allocation8 [shape = 'u8[4096]{0}', space=vmem, size = 0x1000, scoped, tag = 'output window, operand 0, single buffered']
    %10 = vsyncpa [#allocation4], 0
    %11 = vsyncpa [#allocation7], 0
    %12 = vsyncpa [#allocation5], 0
    // Predicated region
    $region2: #{tpu_custom_call.1} parent=1 // pred_check
      _
    $region3: #{tpu_custom_call.1} parent=1 // pred_check_branch
      %14 = sbr.rel (0) target = $region5
    $region4: #{tpu_custom_call.1} parent=1 // pred_region
      _
    $region5: #{tpu_custom_call.1} parent=1 // pred_fallthru
      _
    // Predicated region
    $region6: #{tpu_custom_call.1} parent=1 // pred_check
      _
    $region7: #{tpu_custom_call.1} parent=1 // pred_check_branch
      %16 = sbr.rel (0) target = $region9
    $region8: #{tpu_custom_call.1} parent=1 // pred_region
      %18 = vsyncadd [#allocation4], 0
      %s20 = sshll.u32 %s1, 4
      %s21 = int_to_ptr.hbm [resolvable:$true] %s20
      %s22 = sshll.u32 [#allocation3], 4
      %s23 = int_to_ptr.vmem [resolvable:$true] %s22
      %25 = dma.hbm_to_vmem [thread:$0]  %s21, 128, %s23, [#allocation4]
    $region9: #{tpu_custom_call.1} parent=1 // pred_fallthru
      _
    // Predicated region
    $region10: #{tpu_custom_call.1} parent=1 // pred_check
      _
    $region11: #{tpu_custom_call.1} parent=1 // pred_check_branch
      %27 = sbr.rel (0) target = $region13
    $region12: #{tpu_custom_call.1} parent=1 // pred_region
      _
    $region13: #{tpu_custom_call.1} parent=1 // pred_fallthru
      _
    // Predicated region
    $region14: #{tpu_custom_call.1} parent=1 // pred_check
      _
    $region15: #{tpu_custom_call.1} parent=1 // pred_check_branch
      %29 = sbr.rel (0) target = $region17
    $region16: #{tpu_custom_call.1} parent=1 // pred_region
      %31 = vsyncadd [#allocation7], 0
      %s32 = sshll.u32 %s3, 4
      %s33 = int_to_ptr.hbm [resolvable:$true] %s32
      %s34 = sshll.u32 [#allocation6], 4
      %s35 = int_to_ptr.vmem [resolvable:$true] %s34
      %40 = dma.hbm_to_vmem [thread:$0]  %s33, 2048, %s35, [#allocation7], 128, 128, 8
    $region17: #{tpu_custom_call.1} parent=1 // pred_fallthru
      _
    // Predicated region
    $region18: #{tpu_custom_call.1} parent=1 // pred_check
      _
    $region19: #{tpu_custom_call.1} parent=1 // pred_check_branch
      %42 = sbr.rel (0) target = $region21
    $region20: #{tpu_custom_call.1} parent=1 // pred_region
      %44 = dma.done [#allocation4], 128
    $region21: #{tpu_custom_call.1} parent=1 // pred_fallthru
      _
    // Predicated region
    $region22: #{tpu_custom_call.1} parent=1 // pred_check
      _
    $region23: #{tpu_custom_call.1} parent=1 // pred_check_branch
      %46 = sbr.rel (0) target = $region25
    $region24: #{tpu_custom_call.1} parent=1 // pred_region
      %48 = dma.done [#allocation7], 2048
    $region25: #{tpu_custom_call.1} parent=1 // pred_fallthru
      _
    %s49 = sld [smem:[#allocation2]]
    %v50 = vld [vmem:[#allocation3] sm:$0xff]
    %v51 = vld [vmem:[%s2] sm:$0x1]
    %v53 = vperm.slane %v51, 0
    %v55 = vsub.f32 %v50, %v53
    %v56 = vmul.f32 %v55, %v55
    %57 = vadd.xlane.f32.xlu0 %v56
    %v58 = vpop.xlane.xlu0 %57
    %v59 = vmax.f32 %v58, 1e-24
    %v60 = vrsqrt.pop %v59
    %v61 = vmul.f32 %v60, %v59
    %v62 = vmul.f32 %v61, %v60
    %v63 = vmul.f32 0.5, %v62
    %v64 = vsub.f32 1.5, %v63
    %v65 = vmul.f32 %v60, %v64
    %vm66 = vweird.f32 %v59
    %vm67 = vweird.f32 %v60
    %vm68 = vmor %vm66, %vm67
    %v69 = vsel %vm68, %v60, %v65
    %v70 = vmul.f32 %v55, %v69
    %v71 = vld [vmem:[#allocation6] sm:$0xff]
    %v72 = vld [vmem:[#allocation6 + $0x8] sm:$0xff]
    %v73 = vld [vmem:[#allocation6 + $0x10] sm:$0xff]
    %v74 = vld [vmem:[#allocation6 + $0x18] sm:$0xff]
    %v75 = vld [vmem:[#allocation6 + $0x20] sm:$0xff]
    %v76 = vld [vmem:[#allocation6 + $0x28] sm:$0xff]
    %v77 = vld [vmem:[#allocation6 + $0x30] sm:$0xff]
    %v78 = vld [vmem:[#allocation6 + $0x38] sm:$0xff]
    %v79 = vld [vmem:[#allocation6 + $0x40] sm:$0xff]
    %v80 = vld [vmem:[#allocation6 + $0x48] sm:$0xff]
    %v81 = vld [vmem:[#allocation6 + $0x50] sm:$0xff]
    %v82 = vld [vmem:[#allocation6 + $0x58] sm:$0xff]
    %v83 = vld [vmem:[#allocation6 + $0x60] sm:$0xff]
    %v84 = vld [vmem:[#allocation6 + $0x68] sm:$0xff]
    %v85 = vld [vmem:[#allocation6 + $0x70] sm:$0xff]
    %v86 = vld [vmem:[#allocation6 + $0x78] sm:$0xff]
    %87 = vmatpush.xpose.msra.mxu0 %v86
    %88 = vmatpush.xpose.msra.mxu0 %v85
    %89 = vmatpush.xpose.msra.mxu0 %v84
    %90 = vmatpush.xpose.msra.mxu0 %v83
    %91 = vmatpush.xpose.msra.mxu0 %v82
    %92 = vmatpush.xpose.msra.mxu0 %v81
    %93 = vmatpush.xpose.msra.mxu0 %v80
    %94 = vmatpush.xpose.msra.mxu0 %v79
    %95 = vmatpush.xpose.msra.mxu0 %v78
    %96 = vmatpush.xpose.msra.mxu0 %v77
    %97 = vmatpush.xpose.msra.mxu0 %v76
    %98 = vmatpush.xpose.msra.mxu0 %v75
    %99 = vmatpush.xpose.msra.mxu0 %v74
    %100 = vmatpush.xpose.msra.mxu0 %v73
    %101 = vmatpush.xpose.msra.mxu0 %v72
    %102 = vmatpush.xpose.msra.mxu0 %v71
    %103 = vmatmul.f32.gmra.mxu0 %v70
    %v104 = vpop.f32.mrf.mxu0
    %v105 = vadd.f32 0.0, %v104
    %106 = vdwg.mxu0
    %v107 = vmul.f32 %v105, %v105
    %108 = vadd.xlane.f32.xlu0 %v107
    %v109 = vpop.xlane.xlu0 %108
    %v110 = vmax.f32 %v109, 1e-24
    %v111 = vrsqrt.pop %v110
    %v112 = vmul.f32 %v111, %v110
    %v113 = vmul.f32 %v112, %v111
    %v114 = vmul.f32 0.5, %v113
    %v115 = vsub.f32 1.5, %v114
    %v116 = vmul.f32 %v111, %v115
    %vm117 = vweird.f32 %v110
    %vm118 = vweird.f32 %v111
    %vm119 = vmor %vm117, %vm118
    %v120 = vsel %vm119, %v111, %v116
    %v121 = vstv %s49
    %v122 = vmul.f32 %v120, %v121
    %v123 = vmul.f32 %v105, %v122
    %124 = vst [vmem:[#allocation8] sm:$0xff] %v123
    // Predicated region
    $region26: #{tpu_custom_call.1} parent=1 // pred_check
      _
    $region27: #{tpu_custom_call.1} parent=1 // pred_check_branch
      %126 = sbr.rel (0) target = $region29
    $region28: #{tpu_custom_call.1} parent=1 // pred_region
      %128 = vsyncadd [#allocation5], 0
      %s130 = sshll.u32 [#allocation8], 4
      %s131 = int_to_ptr.vmem [resolvable:$true] %s130
      %s132 = sshll.u32 %s4, 4
      %s133 = int_to_ptr.hbm [resolvable:$true] %s132
      %135 = dma.vmem_to_hbm [thread:$0]  %s131, 128, %s133, [#allocation5]
    $region29: #{tpu_custom_call.1} parent=1 // pred_fallthru
      _
    // Predicated region
    $region30: #{tpu_custom_call.1} parent=1 // pred_check
      _
    $region31: #{tpu_custom_call.1} parent=1 // pred_check_branch
      %137 = sbr.rel (0) target = $region33
    $region32: #{tpu_custom_call.1} parent=1 // pred_region
      %139 = dma.done [#allocation5], 128
    $region33: #{tpu_custom_call.1} parent=1 // pred_fallthru
      _
    %140 = vsyncpa [#allocation4], 1
    %141 = vsyncpa [#allocation7], 1
    %142 = vsyncpa [#allocation5], 1

</llo_original>
